<compile_context>
chip_gen: v7x
topology: tpu7x:2x2x1
jax: 0.10.0
libtpu: 0.0.40
codegen_flags: <defaults>
</compile_context>

<pallas_src>
import functools

import jax
import jax.numpy as jnp
from jax import lax
from jax.experimental import pallas as pl
from jax.experimental.pallas import tpu as pltpu

_LANE = 128
_MAX_BLOCK_ROWS = 2048          # (2048, 128) f32 = 1 MiB per input block buffer


def _round_up(x, m):
    return ((x + m - 1) // m) * m


def _pow_static(x, gamma):
    """diff ** gamma specialized at trace time (avoids exp/log for common gammas)."""
    g = float(gamma)
    if g == 2.0:
        return x * x
    if g == 1.0:
        return x
    if g == 0.5:
        return jnp.sqrt(x)
    if g.is_integer() and 0.0 <= g <= 8.0:
        e = int(g)
        if e == 0:
            return jnp.ones_like(x)
        result, base = None, x
        while e:
            if e & 1:
                result = base if result is None else result * base
            e >>= 1
            if e:
                base = base * base
        return result
    return jnp.power(x, g)


def _num_tensorcores():
    """Best-effort TensorCores-per-chip: 2 on v7x (and v4/v5p megacore), else 1."""
    try:
        kind = jax.devices()[0].device_kind.lower()
    except Exception:
        return 1
    if any(tag in kind for tag in ("v7", "7x", "v4", "v5p")):
        return 2
    return 1


def _hmap_loss_kernel(pred_ref, target_ref, out_ref, *, gamma, block_rows,
                      num_tiles, tiles_per_split, tail_rows, partial_last,
                      has_phantom):
    i = pl.program_id(1)
    t = pl.program_id(0) * tiles_per_split + i      # logical tile id

    @pl.when(i == 0)
    def _init():
        out_ref[...] = jnp.zeros_like(out_ref)

    sub = block_rows // 8

    def tile_body(masked):
        pred = pred_ref[...].astype(jnp.float32)
        target = target_ref[...].astype(jnp.float32)
        if masked:
            # Row-level validity for the (statically known) partial last tile.
            row = lax.broadcasted_iota(jnp.int32, (block_rows, _LANE), 0)
            valid = row < tail_rows
            # Sanitize garbage rows before the transcendentals.
            pred = jnp.where(valid, pred, 0.0)
            target = jnp.where(valid, target, 0.0)

        # sigmoid(x) == 0.5*tanh(0.5*x) + 0.5 -> single EUP op (no exp + recip).
        sig = 0.5 * jnp.tanh(0.5 * pred) + 0.5
        diff = jnp.abs(target - sig)
        elem = -_pow_static(diff, gamma) * jnp.log(1.0 - diff + 1e-14)

        pos = target >= 0.004
        if masked:
            pos = jnp.logical_and(valid, pos)
            neg = jnp.logical_and(valid, target < 0.004)
        else:
            neg = jnp.logical_not(pos)

        pos_t = jnp.where(pos, elem * target, 0.0)
        cnt_t = jnp.where(pos, 1.0, 0.0)
        neg_t = jnp.where(neg, elem, 0.0)

        # In-tile partial reduction: pure VALU vreg-tree, result is one vreg each.
        pos_p = pos_t.reshape(sub, 8, _LANE).sum(axis=0)
        cnt_p = cnt_t.reshape(sub, 8, _LANE).sum(axis=0)
        neg_p = neg_t.reshape(sub, 8, _LANE).sum(axis=0)

        # Accumulate into the resident lane-dense output block (sublane-aligned,
        # full-width -> unmasked vst).
        out_ref[0:8, :] += pos_p
        out_ref[8:16, :] += cnt_p
        out_ref[16:24, :] += neg_p

    last = num_tiles - 1
    if partial_last:
        if num_tiles > 1:
            @pl.when(t < last)
            def _fast():
                tile_body(False)

        @pl.when(t == last)
        def _tail():
            tile_body(True)
    elif has_phantom:
        @pl.when(t < num_tiles)
        def _real():
            tile_body(False)
    else:
        tile_body(False)


def _partial_sums_jax(pred, target, gamma):
    """(pos_sum, pos_cnt, neg_sum) for a small 1-D chunk in plain JAX."""
    pred = pred.astype(jnp.float32)
    target = target.astype(jnp.float32)
    diff = jnp.abs(target - jax.nn.sigmoid(pred))
    elem = -_pow_static(diff, gamma) * jnp.log(1.0 - diff + 1e-14)
    pos = target >= 0.004
    pos_sum = jnp.sum(jnp.where(pos, elem * target, 0.0))
    pos_cnt = jnp.sum(pos.astype(jnp.float32))
    neg_sum = jnp.sum(jnp.where(pos, 0.0, elem))
    return pos_sum, pos_cnt, neg_sum


def _finish(pos_sum, pos_cnt, neg_sum, n, alpha):
    # torch semantics: mean over an empty selection -> NaN (propagates).
    neg_cnt = jnp.float32(n) - pos_cnt
    pos_mean = pos_sum / pos_cnt
    neg_mean = neg_sum / neg_cnt
    pos_ratio = pos_cnt / jnp.float32(n)
    a = jnp.maximum(jnp.float32(alpha), pos_ratio)
    loss = a * pos_mean + (1.0 - a) * neg_mean
    return loss, pos_mean, neg_mean


def hmap_loss(pred, target, gamma=2.0, alpha=0.25, num_cores=None):
    assert pred.shape == target.shape
    n = int(pred.size)
    assert n > 0, "empty input has no defined HMapLoss"
    if num_cores is None:
        num_cores = _num_tensorcores()

    pred_flat = pred.reshape(-1)
    target_flat = target.reshape(-1)

    rows = n // _LANE
    kern_rows = rows if rows >= 8 else 0
    kern_elems = kern_rows * _LANE

    # Ragged <128-element tail (and sub-8-row inputs) handled in plain JAX.
    if kern_elems < n:
        tail_sums = _partial_sums_jax(pred_flat[kern_elems:],
                                      target_flat[kern_elems:], gamma)
    else:
        z = jnp.float32(0.0)
        tail_sums = (z, z, z)

    if kern_rows == 0:
        return _finish(*tail_sums, n, alpha)

    if kern_elems == n:
        pred2d = pred_flat.reshape(kern_rows, _LANE)       # free bitcast
        target2d = target_flat.reshape(kern_rows, _LANE)
    else:
        # TODO(synk): this static prefix slice re-materializes the aligned prefix
        # once in HBM; a fully copy-free ragged tail would need a manual-DMA kernel.
        pred2d = pred_flat[:kern_elems].reshape(kern_rows, _LANE)
        target2d = target_flat[:kern_elems].reshape(kern_rows, _LANE)

    rows8 = (kern_rows // 8) * 8                           # >= 8 here
    nsplit = num_cores if (num_cores > 1 and rows8 >= 16) else 1
    # Balanced tile count: multiple of the core split, each tile <= ~_MAX_BLOCK_ROWS.
    want = _round_up(max(pl.cdiv(kern_rows, _MAX_BLOCK_ROWS), nsplit), nsplit)
    block_rows = min(_round_up(pl.cdiv(kern_rows, want), 8), rows8)
    num_tiles = pl.cdiv(kern_rows, block_rows)             # true (non-empty) tile count
    tiles_per_split = pl.cdiv(num_tiles, nsplit)
    has_phantom = nsplit * tiles_per_split > num_tiles
    tail_rows = kern_rows - (num_tiles - 1) * block_rows
    partial_last = tail_rows < block_rows

    def in_map(p, i):
        # Clamp keeps the DMA in range for a phantom tile (its compute is skipped).
        return (jnp.minimum(p * tiles_per_split + i, num_tiles - 1), 0)

    kernel = functools.partial(
        _hmap_loss_kernel, gamma=gamma, block_rows=block_rows,
        num_tiles=num_tiles, tiles_per_split=tiles_per_split,
        tail_rows=tail_rows, partial_last=partial_last, has_phantom=has_phantom)

    partials = pl.pallas_call(
        kernel,
        out_shape=jax.ShapeDtypeStruct((nsplit, 24, _LANE), jnp.float32),
        grid_spec=pltpu.PrefetchScalarGridSpec(
            num_scalar_prefetch=0,
            grid=(nsplit, tiles_per_split),
            in_specs=[
                pl.BlockSpec((block_rows, _LANE), in_map),
                pl.BlockSpec((block_rows, _LANE), in_map),
            ],
            out_specs=pl.BlockSpec((None, 24, _LANE), lambda p, i: (p, 0, 0)),
        ),
        compiler_params=pltpu.CompilerParams(
            dimension_semantics=("parallel", "arbitrary"),
            vmem_limit_bytes=32 * 1024 * 1024),
    )(pred2d, target2d)

    pos_sum = jnp.sum(partials[:, 0:8, :]) + tail_sums[0]
    pos_cnt = jnp.sum(partials[:, 8:16, :]) + tail_sums[1]
    neg_sum = jnp.sum(partials[:, 16:24, :]) + tail_sums[2]
    return _finish(pos_sum, pos_cnt, neg_sum, n, alpha)


def _reference(pred, target, gamma=2.0, alpha=0.25):
    # Pure-JAX replica of the PyTorch forward (sanity check).
    pred = pred.astype(jnp.float32).reshape(-1)
    target = target.astype(jnp.float32).reshape(-1)
    diff = jnp.abs(target - jax.nn.sigmoid(pred))
    elem = -(diff ** gamma) * jnp.log(1.0 - diff + 1e-14)
    pos = target >= 0.004
    neg = target < 0.004
    pos_cnt = jnp.sum(pos)
    neg_cnt = jnp.sum(neg)
    pos_mean = jnp.sum(jnp.where(pos, elem * target, 0.0)) / pos_cnt
    neg_mean = jnp.sum(jnp.where(neg, elem, 0.0)) / neg_cnt
    pos_ratio = (pos_cnt / (pos_cnt + neg_cnt)).astype(jnp.float32)
    a = jnp.maximum(jnp.float32(alpha), pos_ratio)
    return a * pos_mean + (1.0 - a) * neg_mean, pos_mean, neg_mean


if __name__ == "__main__":
    key = jax.random.PRNGKey(0)

    def make_inputs(k, shape):
        kp, kt = jax.random.split(k)
        pred = jax.random.normal(kp, shape, dtype=jnp.float32)
        u = jax.random.uniform(kt, shape, dtype=jnp.float32)
        target = jnp.where(u > 0.8, u, 0.0)   # sparse heatmap peaks
        return pred, target

    shapes = [
        (2, 4, 16, 16),     # spec-sized case: single full tile, fast path only
        (2, 4, 25, 13),     # ragged: masked partial last tile + plain-JAX lane tail
        (2, 4, 288, 256),   # multi-tile balanced accumulation path
        (2, 4, 5, 5),       # <8 rows: pure-JAX fallback
    ]
    keys = jax.random.split(key, len(shapes))
    for k, shape in zip(keys, shapes):
        pred, target = make_inputs(k, shape)
        out = hmap_loss(pred, target)
        jax.block_until_ready(out)
        ref = _reference(pred, target)
        for got, want in zip(out, ref):
            assert jnp.allclose(got, want, rtol=2e-4, atol=1e-5), (shape, out, ref)

    print("KERNEL_OK")
</pallas_src>

<mosaic_0001>
module attributes {stable_mosaic.version = 11 : i64} {
  func.func @_hmap_loss_kernel(%arg0: i32, %arg1: i32, %arg2: memref<16x128xf32, #tpu.memory_space<vmem>>, %arg3: memref<16x128xf32, #tpu.memory_space<vmem>>, %arg4: memref<1x24x128xf32, #tpu.memory_space<vmem>>) attributes {dimension_semantics = [#tpu.dimension_semantics<parallel>, #tpu.dimension_semantics<arbitrary>], iteration_bounds = array<i64: 1, 1>, scalar_prefetch = 0 : i64, scratch_operands = 0 : i64, tpu.core_type = #tpu.core_type<tc>, window_params = [{transform_indices = @transform_0, window_bounds = array<i64: 16, 128>}, {transform_indices = @transform_1, window_bounds = array<i64: 16, 128>}, {transform_indices = @transform_2, window_bounds = array<i64: 1, 24, 128>}]} {
    %c0_i32 = arith.constant 0 : i32
    %0 = arith.cmpi eq, %arg1, %c0_i32 : i32
    %1 = arith.extui %0 : i1 to i32
    %c0_i32_0 = arith.constant 0 : i32
    %2 = arith.cmpi ne, %1, %c0_i32_0 : i32
    scf.if %2 {
      %cst_34 = arith.constant 0.000000e+00 : f32
      %58 = vector.broadcast %cst_34 : f32 to vector<24x128xf32>
      %c0_35 = arith.constant 0 : index
      %c0_36 = arith.constant 0 : index
      %c0_37 = arith.constant 0 : index
      %59 = vector.load %arg4[%c0_35, %c0_36, %c0_37] : memref<1x24x128xf32, #tpu.memory_space<vmem>>, vector<1x24x128xf32>
      %60 = vector.shape_cast %59 : vector<1x24x128xf32> to vector<24x128xf32>
      %61 = vector.shape_cast %58 : vector<24x128xf32> to vector<1x24x128xf32>
      tpu.vector_store %arg4[%c0_35, %c0_36, %c0_37], %61 {strides = array<i32>} : memref<1x24x128xf32, #tpu.memory_space<vmem>>, vector<1x24x128xf32>,
    } else {
    }
    %c0 = arith.constant 0 : index
    %c0_1 = arith.constant 0 : index
    %3 = vector.load %arg2[%c0, %c0_1] : memref<16x128xf32, #tpu.memory_space<vmem>>, vector<16x128xf32>
    %c0_2 = arith.constant 0 : index
    %c0_3 = arith.constant 0 : index
    %4 = vector.load %arg3[%c0_2, %c0_3] : memref<16x128xf32, #tpu.memory_space<vmem>>, vector<16x128xf32>
    %cst = arith.constant 5.000000e-01 : f32
    %5 = vector.broadcast %cst : f32 to vector<16x128xf32>
    %6 = arith.mulf %5, %3 : vector<16x128xf32>
    %7 = math.tanh %6 : vector<16x128xf32>
    %cst_4 = arith.constant 5.000000e-01 : f32
    %8 = vector.broadcast %cst_4 : f32 to vector<16x128xf32>
    %9 = arith.mulf %8, %7 : vector<16x128xf32>
    %cst_5 = arith.constant 5.000000e-01 : f32
    %10 = vector.broadcast %cst_5 : f32 to vector<16x128xf32>
    %11 = arith.addf %9, %10 : vector<16x128xf32>
    %12 = arith.subf %4, %11 : vector<16x128xf32>
    %13 = math.absf %12 : vector<16x128xf32>
    %14 = arith.mulf %13, %13 : vector<16x128xf32>
    %cst_6 = arith.constant 0.000000e+00 : f32
    %15 = vector.broadcast %cst_6 : f32 to vector<16x128xf32>
    %16 = arith.subf %15, %14 : vector<16x128xf32>
    %cst_7 = arith.constant 1.000000e+00 : f32
    %17 = vector.broadcast %cst_7 : f32 to vector<16x128xf32>
    %18 = arith.subf %17, %13 : vector<16x128xf32>
    %cst_8 = arith.constant 9.99999982E-15 : f32
    %19 = vector.broadcast %cst_8 : f32 to vector<16x128xf32>
    %20 = arith.addf %18, %19 : vector<16x128xf32>
    %21 = math.log %20 : vector<16x128xf32>
    %22 = arith.mulf %16, %21 : vector<16x128xf32>
    %cst_9 = arith.constant 4.000000e-03 : f32
    %23 = vector.broadcast %cst_9 : f32 to vector<16x128xf32>
    %24 = arith.cmpf oge, %4, %23 : vector<16x128xf32>
    %cst_10 = arith.constant dense<true> : vector<16x128xi1>
    %25 = arith.xori %24, %cst_10 : vector<16x128xi1>
    %26 = arith.mulf %22, %4 : vector<16x128xf32>
    %cst_11 = arith.constant 0.000000e+00 : f32
    %27 = vector.broadcast %cst_11 : f32 to vector<16x128xf32>
    %28 = arith.select %24, %26, %27 : vector<16x128xi1>, vector<16x128xf32>
    %cst_12 = arith.constant 1.000000e+00 : f32
    %cst_13 = arith.constant 0.000000e+00 : f32
    %29 = vector.broadcast %cst_12 : f32 to vector<16x128xf32>
    %30 = vector.broadcast %cst_13 : f32 to vector<16x128xf32>
    %31 = arith.select %24, %29, %30 : vector<16x128xi1>, vector<16x128xf32>
    %cst_14 = arith.constant 0.000000e+00 : f32
    %32 = vector.broadcast %cst_14 : f32 to vector<16x128xf32>
    %33 = arith.select %25, %22, %32 : vector<16x128xi1>, vector<16x128xf32>
    %34 = vector.shape_cast %28 : vector<16x128xf32> to vector<2x8x128xf32>
    %cst_15 = arith.constant dense<0.000000e+00> : vector<8x128xf32>
    %35 = vector.multi_reduction <add>, %34, %cst_15 [0] : vector<2x8x128xf32> to vector<8x128xf32>
    %36 = vector.shape_cast %31 : vector<16x128xf32> to vector<2x8x128xf32>
    %cst_16 = arith.constant dense<0.000000e+00> : vector<8x128xf32>
    %37 = vector.multi_reduction <add>, %36, %cst_16 [0] : vector<2x8x128xf32> to vector<8x128xf32>
    %38 = vector.shape_cast %33 : vector<16x128xf32> to vector<2x8x128xf32>
    %cst_17 = arith.constant dense<0.000000e+00> : vector<8x128xf32>
    %39 = vector.multi_reduction <add>, %38, %cst_17 [0] : vector<2x8x128xf32> to vector<8x128xf32>
    %c0_18 = arith.constant 0 : index
    %c0_19 = arith.constant 0 : index
    %c0_20 = arith.constant 0 : index
    %40 = vector.load %arg4[%c0_18, %c0_19, %c0_20] : memref<1x24x128xf32, #tpu.memory_space<vmem>>, vector<1x8x128xf32>
    %41 = vector.shape_cast %40 : vector<1x8x128xf32> to vector<8x128xf32>
    %42 = arith.addf %41, %35 : vector<8x128xf32>
    %c0_21 = arith.constant 0 : index
    %c0_22 = arith.constant 0 : index
    %c0_23 = arith.constant 0 : index
    %43 = vector.load %arg4[%c0_21, %c0_22, %c0_23] : memref<1x24x128xf32, #tpu.memory_space<vmem>>, vector<1x8x128xf32>
    %44 = vector.shape_cast %43 : vector<1x8x128xf32> to vector<8x128xf32>
    %45 = vector.shape_cast %42 : vector<8x128xf32> to vector<1x8x128xf32>
    tpu.vector_store %arg4[%c0_21, %c0_22, %c0_23], %45 {strides = array<i32>} : memref<1x24x128xf32, #tpu.memory_space<vmem>>, vector<1x8x128xf32>,
    %c0_24 = arith.constant 0 : index
    %c8 = arith.constant 8 : index
    %c0_25 = arith.constant 0 : index
    %46 = vector.load %arg4[%c0_24, %c8, %c0_25] : memref<1x24x128xf32, #tpu.memory_space<vmem>>, vector<1x8x128xf32>
    %47 = vector.shape_cast %46 : vector<1x8x128xf32> to vector<8x128xf32>
    %48 = arith.addf %47, %37 : vector<8x128xf32>
    %c0_26 = arith.constant 0 : index
    %c8_27 = arith.constant 8 : index
    %c0_28 = arith.constant 0 : index
    %49 = vector.load %arg4[%c0_26, %c8_27, %c0_28] : memref<1x24x128xf32, #tpu.memory_space<vmem>>, vector<1x8x128xf32>
    %50 = vector.shape_cast %49 : vector<1x8x128xf32> to vector<8x128xf32>
    %51 = vector.shape_cast %48 : vector<8x128xf32> to vector<1x8x128xf32>
    tpu.vector_store %arg4[%c0_26, %c8_27, %c0_28], %51 {strides = array<i32>} : memref<1x24x128xf32, #tpu.memory_space<vmem>>, vector<1x8x128xf32>,
    %c0_29 = arith.constant 0 : index
    %c16 = arith.constant 16 : index
    %c0_30 = arith.constant 0 : index
    %52 = vector.load %arg4[%c0_29, %c16, %c0_30] : memref<1x24x128xf32, #tpu.memory_space<vmem>>, vector<1x8x128xf32>
    %53 = vector.shape_cast %52 : vector<1x8x128xf32> to vector<8x128xf32>
    %54 = arith.addf %53, %39 : vector<8x128xf32>
    %c0_31 = arith.constant 0 : index
    %c16_32 = arith.constant 16 : index
    %c0_33 = arith.constant 0 : index
    %55 = vector.load %arg4[%c0_31, %c16_32, %c0_33] : memref<1x24x128xf32, #tpu.memory_space<vmem>>, vector<1x8x128xf32>
    %56 = vector.shape_cast %55 : vector<1x8x128xf32> to vector<8x128xf32>
    %57 = vector.shape_cast %54 : vector<8x128xf32> to vector<1x8x128xf32>
    tpu.vector_store %arg4[%c0_31, %c16_32, %c0_33], %57 {strides = array<i32>} : memref<1x24x128xf32, #tpu.memory_space<vmem>>, vector<1x8x128xf32>,
    return
  }
  func.func @transform_0(%arg0: i32, %arg1: i32) -> (i32, i32) {
    %c1_i32 = arith.constant 1 : i32
    %0 = arith.muli %arg0, %c1_i32 : i32
    %1 = arith.addi %0, %arg1 : i32
    %c0_i32 = arith.constant 0 : i32
    %2 = arith.minsi %1, %c0_i32 : i32
    %c0_i32_0 = arith.constant 0 : i32
    %c0_i32_1 = arith.constant 0 : i32
    return %2, %c0_i32_0 : i32, i32
  }
  func.func @transform_1(%arg0: i32, %arg1: i32) -> (i32, i32) {
    %c1_i32 = arith.constant 1 : i32
    %0 = arith.muli %arg0, %c1_i32 : i32
    %1 = arith.addi %0, %arg1 : i32
    %c0_i32 = arith.constant 0 : i32
    %2 = arith.minsi %1, %c0_i32 : i32
    %c0_i32_0 = arith.constant 0 : i32
    %c0_i32_1 = arith.constant 0 : i32
    return %2, %c0_i32_0 : i32, i32
  }
  func.func @transform_2(%arg0: i32, %arg1: i32) -> (i32, i32, i32) {
    %c0_i32 = arith.constant 0 : i32
    %c0_i32_0 = arith.constant 0 : i32
    %c0_i32_1 = arith.constant 0 : i32
    return %arg0, %c0_i32, %c0_i32_0 : i32, i32, i32
  }
}

</mosaic_0001>

<llo_original>
// kernel: tpu_custom_call.1
$region0: #{tpu_custom_call.1}
  #allocation0 [shape = 'u32[]', space=smem, size = 0x4, offset = 0x4, fixed_abs, tag = 'smem constant byte address 0x4 - core index']
  #allocation1 [shape = 'u32[144,128]{1,0:T(1,128)}', space=vmem, size = 0x12000, scoped, tag = 'internal scratch']
  %s0 = inlined_call_operand.hbm [shape: f32[16,128], index: 0, kind: input, shape index: {}]
  %s1 = inlined_call_operand.hbm [shape: f32[16,128], index: 1, kind: input, shape index: {}]
  %s2 = inlined_call_operand.hbm [shape: f32[1,24,128], index: 2, kind: output, shape index: {}]
  %s3 = sld [smem:[#allocation0]]
  $region30: #{tpu_custom_call.1} parent=0
    _
  %s5 = ssub.s32 1, %s3
  %s6 = scalar_select 0, %s5, %s3
  $region1: #{tpu_custom_call.1} parent=0
    #allocation2 [shape = 'u8[8192]{0}', space=vmem, size = 0x2000, scoped, tag = 'input window, operand 0, single buffered']
    #allocation3 [shape = 's32[1]{0}', space=sflag, size = 0x4, scoped, tag = 'scoped memory for tpu_custom_call.1']
    #allocation4 [shape = 's32[1]{0}', space=sflag, size = 0x4, scoped, tag = 'scoped memory for tpu_custom_call.1']
    #allocation5 [shape = 'u8[8192]{0}', space=vmem, size = 0x2000, scoped, tag = 'input window, operand 1, single buffered']
    #allocation6 [shape = 's32[1]{0}', space=sflag, size = 0x4, scoped, tag = 'scoped memory for tpu_custom_call.1']
    #allocation7 [shape = 'u8[12288]{0}', space=vmem, size = 0x3000, scoped, tag = 'output window, operand 0, single buffered']
    %7 = vsyncpa [#allocation3], 0
    %8 = vsyncpa [#allocation6], 0
    %9 = vsyncpa [#allocation4], 0
    // Predicated region
    $region2: #{tpu_custom_call.1} parent=1 // pred_check
      _
    $region3: #{tpu_custom_call.1} parent=1 // pred_check_branch
      %11 = sbr.rel (0) target = $region5
    $region4: #{tpu_custom_call.1} parent=1 // pred_region
      %s12 = sadd.s32 0, 0
      %p13 = scmp.lt.s32.totalorder %s12, 0
      %s14 = scalar_select %p13, %s12, 0
      %s15 = smul.u32 2, %s14
      %s17 = ssub.s32 256, 256
      %18 = vsyncadd [#allocation3], %s17
      %s19 = smul.addr %s15, 128
      %s20 = scalar_lea.hbm %s0, %s19
      %s21 = sshll.u32 [#allocation2], 4
      %s22 = int_to_ptr.vmem [resolvable:$true] %s21
      %27 = dma.hbm_to_vmem [thread:$0]  %s20, 256, %s22, [#allocation3], 128, 128, 8
    $region5: #{tpu_custom_call.1} parent=1 // pred_fallthru
      _
    // Predicated region
    $region6: #{tpu_custom_call.1} parent=1 // pred_check
      _
    $region7: #{tpu_custom_call.1} parent=1 // pred_check_branch
      %29 = sbr.rel (0) target = $region9
    $region8: #{tpu_custom_call.1} parent=1 // pred_region
      %s30 = sadd.s32 0, 0
      %p31 = scmp.lt.s32.totalorder %s30, 0
      %s32 = scalar_select %p31, %s30, 0
      %s33 = smul.u32 2, %s32
      %s35 = ssub.s32 256, 256
      %36 = vsyncadd [#allocation6], %s35
      %s37 = smul.addr %s33, 128
      %s38 = scalar_lea.hbm %s1, %s37
      %s39 = sshll.u32 [#allocation5], 4
      %s40 = int_to_ptr.vmem [resolvable:$true] %s39
      %45 = dma.hbm_to_vmem [thread:$0]  %s38, 256, %s40, [#allocation6], 128, 128, 8
    $region9: #{tpu_custom_call.1} parent=1 // pred_fallthru
      _
    // Predicated region
    $region10: #{tpu_custom_call.1} parent=1 // pred_check
      _
    $region11: #{tpu_custom_call.1} parent=1 // pred_check_branch
      %47 = sbr.rel (0) target = $region13
    $region12: #{tpu_custom_call.1} parent=1 // pred_region
      %48 = dma.done [#allocation3], 256
    $region13: #{tpu_custom_call.1} parent=1 // pred_fallthru
      _
    // Predicated region
    $region14: #{tpu_custom_call.1} parent=1 // pred_check
      _
    $region15: #{tpu_custom_call.1} parent=1 // pred_check_branch
      %50 = sbr.rel (0) target = $region17
    $region16: #{tpu_custom_call.1} parent=1 // pred_region
      %51 = dma.done [#allocation6], 256
    $region17: #{tpu_custom_call.1} parent=1 // pred_fallthru
      _
    %s52 = sadd.s32 0, 0
    %p53 = scmp.lt.s32.totalorder %s52, 0
    %s54 = scalar_select %p53, %s52, 0
    %s55 = smul.u32 2, %s54
    %s56 = sadd.s32 0, 0
    %p57 = scmp.lt.s32.totalorder %s56, 0
    %s58 = scalar_select %p57, %s56, 0
    %s59 = smul.u32 2, %s58
    %p60 = scmp.eq.s32.totalorder 0, 0
    // Predicated region
    $region18: #{tpu_custom_call.1} parent=1 // pred_check
      %p61 = pneg %p60
    $region19: #{tpu_custom_call.1} parent=1 // pred_check_branch
      %63 = sbr.rel (%p61) target = $region21
    $region20: #{tpu_custom_call.1} parent=1 // pred_region
      %64 = vst [vmem:[#allocation7] sm:$0xff] 0.0
      %65 = vst [vmem:[#allocation7 + $0x8] sm:$0xff] 0.0
      %66 = vst [vmem:[#allocation7 + $0x10] sm:$0xff] 0.0
    $region21: #{tpu_custom_call.1} parent=1 // pred_fallthru
      _
    %v67 = vld [vmem:[#allocation2] sm:$0xff]
    %v68 = vld [vmem:[#allocation2 + $0x8] sm:$0xff]
    %v69 = vld [vmem:[#allocation5] sm:$0xff]
    %v70 = vld [vmem:[#allocation5 + $0x8] sm:$0xff]
    %v71 = vmul.f32 %v67, 0.5
    %v72 = vmul.f32 %v68, 0.5
    %v73 = vtanh.pop %v71
    %v74 = vtanh.pop %v72
    %v75 = vmul.f32 %v73, 0.5
    %v76 = vmul.f32 %v74, 0.5
    %v77 = vadd.f32 %v75, 0.5
    %v78 = vadd.f32 %v76, 0.5
    %v79 = vsub.f32 %v69, %v77
    %v80 = vsub.f32 %v70, %v78
    %v81 = vand.u32 2147483647, %v79
    %v82 = vand.u32 2147483647, %v80
    %v83 = vmul.f32 %v81, %v81
    %v84 = vmul.f32 %v82, %v82
    %v85 = vsub.f32 0.0, %v83
    %v86 = vsub.f32 0.0, %v84
    %v87 = vsub.f32 1.0, %v81
    %v88 = vsub.f32 1.0, %v82
    %v89 = vadd.f32 %v87, 1e-14
    %v90 = vadd.f32 %v88, 1e-14
    %v91 = vlog2.pop %v89
    %v92 = vmul.f32 %v91, 0.6931472
    %v93 = vlog2.pop %v90
    %v94 = vmul.f32 %v93, 0.6931472
    %v95 = vmul.f32 %v85, %v92
    %v96 = vmul.f32 %v86, %v94
    %vm97 = vcmp.ge.f32.partialorder %v69, 0.004
    %vm98 = vcmp.ge.f32.partialorder %v70, 0.004
    %vm99 = vmxor %vm97, 1
    %vm100 = vmxor %vm98, 1
    %v101 = vmul.f32 %v95, %v69
    %v102 = vmul.f32 %v96, %v70
    %v103 = vsel %vm97, %v101, 0.0
    %v104 = vsel %vm98, %v102, 0.0
    %v105 = vsel %vm97, 1.0, 0.0
    %v106 = vsel %vm98, 1.0, 0.0
    %v107 = vsel %vm99, %v95, 0.0
    %v108 = vsel %vm100, %v96, 0.0
    %v109 = vadd.f32 %v103, %v104
    %v110 = vadd.f32 %v105, %v106
    %v111 = vadd.f32 %v107, %v108
    %v112 = vld [vmem:[#allocation7] sm:$0xff]
    %v113 = vadd.f32 %v112, %v109
    %114 = vst [vmem:[#allocation7] sm:$0xff] %v113
    %v115 = vld [vmem:[#allocation7 + $0x8] sm:$0xff]
    %v116 = vadd.f32 %v115, %v110
    %117 = vst [vmem:[#allocation7 + $0x8] sm:$0xff] %v116
    %v118 = vld [vmem:[#allocation7 + $0x10] sm:$0xff]
    %v119 = vadd.f32 %v118, %v111
    %120 = vst [vmem:[#allocation7 + $0x10] sm:$0xff] %v119
    // Predicated region
    $region22: #{tpu_custom_call.1} parent=1 // pred_check
      _
    $region23: #{tpu_custom_call.1} parent=1 // pred_check_branch
      %122 = sbr.rel (0) target = $region25
    $region24: #{tpu_custom_call.1} parent=1 // pred_region
      %s124 = ssub.s32 384, 384
      %125 = vsyncadd [#allocation4], %s124
      %s126 = sshll.u32 [#allocation7], 4
      %s127 = int_to_ptr.vmem [resolvable:$true] %s126
      %132 = dma.vmem_to_hbm [thread:$0]  %s127, 384, %s2, [#allocation4], 128, 128, 8
    $region25: #{tpu_custom_call.1} parent=1 // pred_fallthru
      _
    // Predicated region
    $region26: #{tpu_custom_call.1} parent=1 // pred_check
      _
    $region27: #{tpu_custom_call.1} parent=1 // pred_check_branch
      %134 = sbr.rel (0) target = $region29
    $region28: #{tpu_custom_call.1} parent=1 // pred_region
      %135 = dma.done [#allocation4], 384
    $region29: #{tpu_custom_call.1} parent=1 // pred_fallthru
      _
    %136 = vsyncpa [#allocation3], 1
    %137 = vsyncpa [#allocation6], 1
    %138 = vsyncpa [#allocation4], 1

</llo_original>
